<compile_context>
chip_gen: v5e
topology: v5e:2x2
jax: 0.10.0
libtpu: 0.0.40
codegen_flags: <defaults>
</compile_context>

<pallas_src>
import jax
import jax.numpy as jnp
from jax.experimental import pallas as pl
from jax.experimental.pallas import tpu as pltpu


def _round_up(v, m):
    return ((v + m - 1) // m) * m


def _mlp_kernel(x_ref, w1_ref, b1_ref, w2_ref, b2_ref, w3_ref, b3_ref, o_ref):
    # x arrives in f32 (no wrapper-side cast => half the x HBM traffic);
    # cast to bf16 right before the MXU dot.
    x = x_ref[...].astype(w1_ref.dtype)
    # Layer 1: Linear (bf16 x bf16 -> f32 acc) + (eval) Dropout + ReLU
    h1 = jnp.dot(x, w1_ref[...], preferred_element_type=jnp.float32)
    h1 = jnp.maximum(h1 + b1_ref[...], 0.0)
    # Layer 2: Linear + (eval) Dropout + ReLU
    h2 = jnp.dot(h1.astype(w2_ref.dtype), w2_ref[...],
                 preferred_element_type=jnp.float32)
    h2 = jnp.maximum(h2 + b2_ref[...], 0.0)
    # Output layer: Linear (no activation), lane-padded to 128 outputs
    out = jnp.dot(h2.astype(w3_ref.dtype), w3_ref[...],
                  preferred_element_type=jnp.float32)
    out = out + b3_ref[...]
    # bf16 store -> lane-dense and half the writeback bytes.
    o_ref[...] = out.astype(o_ref.dtype)


def prepare_params(params, compute_dtype=jnp.bfloat16, lane_pad=128):
    """One-time prep: bf16 weights, f32 biases, output layer lane-padded to 128."""
    w3, b3 = params["w3"], params["b3"]
    cout = w3.shape[1]
    cout_pad = max(lane_pad, _round_up(cout, lane_pad))
    w3p = jnp.pad(w3, ((0, 0), (0, cout_pad - cout)))
    b3p = jnp.pad(b3, ((0, 0), (0, cout_pad - cout)))
    return {
        "w1": params["w1"].astype(compute_dtype),
        "b1": params["b1"].astype(jnp.float32),
        "w2": params["w2"].astype(compute_dtype),
        "b2": params["b2"].astype(jnp.float32),
        "w3": w3p.astype(compute_dtype),
        "b3": b3p.astype(jnp.float32),
        "out_channels": int(cout),
    }


def _pick_tile_m(B, tile_m):
    """Batch tile: big enough to amortize per-step overhead, 16-aligned for
    bf16 sublane packing, and leaving >=2 parallel steps for v7x megacore."""
    tile = min(int(tile_m), 1024)          # >1024 would need vmem_limit_bytes on v5e
    if B >= 32:                            # keep >= 2 grid steps when the batch allows
        tile = min(tile, _round_up(-(-B // 2), 16))
    tile = min(tile, _round_up(B, 16))     # don't over-allocate for tiny batches
    return max(16, _round_up(tile, 16))


def regressor_forward(x, prepared, *, tile_m=512, store_dtype=jnp.bfloat16):
    """x: (B, in_channels) float32. prepared: output of prepare_params().

    Returns (B, out_channels) float32 (eval-mode forward of the Regressor).
    """
    w1, b1 = prepared["w1"], prepared["b1"]
    w2, b2 = prepared["w2"], prepared["b2"]
    w3, b3 = prepared["w3"], prepared["b3"]
    cout = prepared["out_channels"]

    B, Cin = x.shape
    Cm1 = w1.shape[1]
    Cm2 = w2.shape[1]
    Cout_pad = w3.shape[1]

    tile = _pick_tile_m(B, tile_m)
    grid = (pl.cdiv(B, tile),)             # partial last block: reads padded, writes masked

    out_padded = pl.pallas_call(
        _mlp_kernel,
        out_shape=jax.ShapeDtypeStruct((B, Cout_pad), store_dtype),
        grid_spec=pltpu.PrefetchScalarGridSpec(
            num_scalar_prefetch=0,
            grid=grid,
            in_specs=[
                # x: the only batch-streamed operand (f32, cast in-kernel)
                pl.BlockSpec((tile, Cin), lambda i: (i, 0)),
                # weights/biases: constant index_map -> resident, no re-DMA
                pl.BlockSpec((Cin, Cm1), lambda i: (0, 0)),
                pl.BlockSpec((1, Cm1), lambda i: (0, 0)),
                pl.BlockSpec((Cm1, Cm2), lambda i: (0, 0)),
                pl.BlockSpec((1, Cm2), lambda i: (0, 0)),
                pl.BlockSpec((Cm2, Cout_pad), lambda i: (0, 0)),
                pl.BlockSpec((1, Cout_pad), lambda i: (0, 0)),
            ],
            out_specs=pl.BlockSpec((tile, Cout_pad), lambda i: (i, 0)),
        ),
        compiler_params=pltpu.CompilerParams(
            dimension_semantics=("parallel",),
        ),
    )(x, w1, b1, w2, b2, w3, b3)

    # Tiny (B, 3) slice + cast back to f32 to match the module's output dtype.
    return out_padded[:, :cout].astype(jnp.float32)


def init_params(key, in_channels, mid_channels, out_channels, dtype=jnp.float32):
    """Deterministic PyTorch-style (kaiming-uniform-ish) init of the MLP."""
    dims = [in_channels] + list(mid_channels) + [out_channels]
    params = {}
    for idx, (fan_in, fan_out) in enumerate(zip(dims[:-1], dims[1:]), start=1):
        key, kw, kb = jax.random.split(key, 3)
        bound = 1.0 / (fan_in ** 0.5)
        # stored as (in_features, out_features) for x @ W
        params[f"w{idx}"] = jax.random.uniform(
            kw, (fan_in, fan_out), dtype, minval=-bound, maxval=bound)
        params[f"b{idx}"] = jax.random.uniform(
            kb, (1, fan_out), dtype, minval=-bound, maxval=bound)
    return params


def _reference_forward_f32(x, params):
    h1 = jnp.maximum(x @ params["w1"] + params["b1"], 0.0)
    h2 = jnp.maximum(h1 @ params["w2"] + params["b2"], 0.0)
    return h2 @ params["w3"] + params["b3"]


def _reference_forward_bf16(x, params):
    """Same math with bf16 matmul inputs / f32 accumulation / bf16 output store."""
    def mm(a, w):
        return jnp.dot(a.astype(jnp.bfloat16), w.astype(jnp.bfloat16),
                       preferred_element_type=jnp.float32)
    h1 = jnp.maximum(mm(x, params["w1"]) + params["b1"], 0.0)
    h2 = jnp.maximum(mm(h1, params["w2"]) + params["b2"], 0.0)
    out = mm(h2, params["w3"]) + params["b3"]
    return out.astype(jnp.bfloat16).astype(jnp.float32)


if __name__ == "__main__":
    IN_CHANNELS = 1280
    MID_CHANNELS = [256, 128]
    OUT_CHANNELS = 3

    key = jax.random.PRNGKey(0)
    key, kx1, kx2 = jax.random.split(key, 3)
    params = init_params(key, IN_CHANNELS, MID_CHANNELS, OUT_CHANNELS)
    prepared = prepare_params(params)   # one-time: bf16 cast + lane-pad of layer 3

    # Small batch (not a multiple of 16) -> exercises the masked partial block.
    x_small = jax.random.normal(kx1, (10, IN_CHANNELS), dtype=jnp.float32)
    # Larger batch -> exercises a multi-step "parallel" grid with a ragged tail.
    x_large = jax.random.normal(kx2, (600, IN_CHANNELS), dtype=jnp.float32)

    for x in (x_small, x_large):
        out = regressor_forward(x, prepared)
        out = jax.block_until_ready(out)
        B = x.shape[0]
        assert out.shape == (B, OUT_CHANNELS), out.shape

        ref_bf16 = _reference_forward_bf16(x, params)
        assert jnp.allclose(out, ref_bf16, atol=1e-2, rtol=1e-2), \
            "mismatch vs bf16-emulated reference"

        ref_f32 = _reference_forward_f32(x, params)
        assert jnp.allclose(out, ref_f32, atol=5e-2, rtol=5e-2), \
            "mismatch vs f32 reference"

    print("KERNEL_OK")
</pallas_src>

<mosaic_0001>
module attributes {stable_mosaic.version = 11 : i64} {
  func.func @_mlp_kernel(%arg0: i32, %arg1: memref<16x1280xf32, #tpu.memory_space<vmem>>, %arg2: memref<1280x256xbf16, #tpu.memory_space<vmem>>, %arg3: memref<1x256xf32, #tpu.memory_space<vmem>>, %arg4: memref<256x128xbf16, #tpu.memory_space<vmem>>, %arg5: memref<1x128xf32, #tpu.memory_space<vmem>>, %arg6: memref<128x128xbf16, #tpu.memory_space<vmem>>, %arg7: memref<1x128xf32, #tpu.memory_space<vmem>>, %arg8: memref<16x128xbf16, #tpu.memory_space<vmem>>) attributes {dimension_semantics = [#tpu.dimension_semantics<parallel>], iteration_bounds = array<i64: 1>, scalar_prefetch = 0 : i64, scratch_operands = 0 : i64, tpu.core_type = #tpu.core_type<tc>, window_params = [{transform_indices = @transform_0, window_bounds = array<i64: 16, 1280>}, {pipeline_mode = #tpu.pipeline_mode<synchronous>, transform_indices = @transform_1, window_bounds = array<i64: 1280, 256>}, {pipeline_mode = #tpu.pipeline_mode<synchronous>, transform_indices = @transform_2, window_bounds = array<i64: 1, 256>}, {pipeline_mode = #tpu.pipeline_mode<synchronous>, transform_indices = @transform_3, window_bounds = array<i64: 256, 128>}, {pipeline_mode = #tpu.pipeline_mode<synchronous>, transform_indices = @transform_4, window_bounds = array<i64: 1, 128>}, {pipeline_mode = #tpu.pipeline_mode<synchronous>, transform_indices = @transform_5, window_bounds = array<i64: 128, 128>}, {pipeline_mode = #tpu.pipeline_mode<synchronous>, transform_indices = @transform_6, window_bounds = array<i64: 1, 128>}, {transform_indices = @transform_7, window_bounds = array<i64: 16, 128>}]} {
    %c0 = arith.constant 0 : index
    %c0_0 = arith.constant 0 : index
    %0 = vector.load %arg1[%c0, %c0_0] : memref<16x1280xf32, #tpu.memory_space<vmem>>, vector<16x1280xf32>
    %1 = arith.truncf %0 : vector<16x1280xf32> to vector<16x1280xbf16>
    %c0_1 = arith.constant 0 : index
    %c0_2 = arith.constant 0 : index
    %2 = vector.load %arg2[%c0_1, %c0_2] : memref<1280x256xbf16, #tpu.memory_space<vmem>>, vector<1280x256xbf16>
    %cst = arith.constant dense<0.000000e+00> : vector<16x256xf32>
    %3 = tpu.matmul %1, %2, %cst {dimension_numbers = #tpu.dot_dimension_numbers<[1], [0], [0], [1], [0, 0, 1, 1], [], []>} : vector<16x1280xbf16>, vector<1280x256xbf16>, vector<16x256xf32> -> vector<16x256xf32>
    %c0_3 = arith.constant 0 : index
    %c0_4 = arith.constant 0 : index
    %4 = vector.load %arg3[%c0_3, %c0_4] : memref<1x256xf32, #tpu.memory_space<vmem>>, vector<1x256xf32>
    %5 = vector.broadcast %4 : vector<1x256xf32> to vector<16x256xf32>
    %6 = arith.addf %3, %5 : vector<16x256xf32>
    %cst_5 = arith.constant 0.000000e+00 : f32
    %7 = vector.broadcast %cst_5 : f32 to vector<16x256xf32>
    %8 = arith.maximumf %6, %7 : vector<16x256xf32>
    %9 = arith.truncf %8 : vector<16x256xf32> to vector<16x256xbf16>
    %c0_6 = arith.constant 0 : index
    %c0_7 = arith.constant 0 : index
    %10 = vector.load %arg4[%c0_6, %c0_7] : memref<256x128xbf16, #tpu.memory_space<vmem>>, vector<256x128xbf16>
    %cst_8 = arith.constant dense<0.000000e+00> : vector<16x128xf32>
    %11 = tpu.matmul %9, %10, %cst_8 {dimension_numbers = #tpu.dot_dimension_numbers<[1], [0], [0], [1], [0, 0, 1, 1], [], []>} : vector<16x256xbf16>, vector<256x128xbf16>, vector<16x128xf32> -> vector<16x128xf32>
    %c0_9 = arith.constant 0 : index
    %c0_10 = arith.constant 0 : index
    %12 = vector.load %arg5[%c0_9, %c0_10] : memref<1x128xf32, #tpu.memory_space<vmem>>, vector<1x128xf32>
    %13 = vector.broadcast %12 : vector<1x128xf32> to vector<16x128xf32>
    %14 = arith.addf %11, %13 : vector<16x128xf32>
    %cst_11 = arith.constant 0.000000e+00 : f32
    %15 = vector.broadcast %cst_11 : f32 to vector<16x128xf32>
    %16 = arith.maximumf %14, %15 : vector<16x128xf32>
    %17 = arith.truncf %16 : vector<16x128xf32> to vector<16x128xbf16>
    %c0_12 = arith.constant 0 : index
    %c0_13 = arith.constant 0 : index
    %18 = vector.load %arg6[%c0_12, %c0_13] : memref<128x128xbf16, #tpu.memory_space<vmem>>, vector<128x128xbf16>
    %cst_14 = arith.constant dense<0.000000e+00> : vector<16x128xf32>
    %19 = tpu.matmul %17, %18, %cst_14 {dimension_numbers = #tpu.dot_dimension_numbers<[1], [0], [0], [1], [0, 0, 1, 1], [], []>} : vector<16x128xbf16>, vector<128x128xbf16>, vector<16x128xf32> -> vector<16x128xf32>
    %c0_15 = arith.constant 0 : index
    %c0_16 = arith.constant 0 : index
    %20 = vector.load %arg7[%c0_15, %c0_16] : memref<1x128xf32, #tpu.memory_space<vmem>>, vector<1x128xf32>
    %21 = vector.broadcast %20 : vector<1x128xf32> to vector<16x128xf32>
    %22 = arith.addf %19, %21 : vector<16x128xf32>
    %23 = arith.truncf %22 : vector<16x128xf32> to vector<16x128xbf16>
    %c0_17 = arith.constant 0 : index
    %c0_18 = arith.constant 0 : index
    %24 = vector.load %arg8[%c0_17, %c0_18] : memref<16x128xbf16, #tpu.memory_space<vmem>>, vector<16x128xbf16>
    tpu.vector_store %arg8[%c0_17, %c0_18], %23 {strides = array<i32>} : memref<16x128xbf16, #tpu.memory_space<vmem>>, vector<16x128xbf16>,
    return
  }
  func.func @transform_0(%arg0: i32) -> (i32, i32) {
    %c0_i32 = arith.constant 0 : i32
    %c0_i32_0 = arith.constant 0 : i32
    return %arg0, %c0_i32 : i32, i32
  }
  func.func @transform_1(%arg0: i32) -> (i32, i32) {
    %c0_i32 = arith.constant 0 : i32
    %c0_i32_0 = arith.constant 0 : i32
    %c0_i32_1 = arith.constant 0 : i32
    return %c0_i32, %c0_i32_0 : i32, i32
  }
  func.func @transform_2(%arg0: i32) -> (i32, i32) {
    %c0_i32 = arith.constant 0 : i32
    %c0_i32_0 = arith.constant 0 : i32
    %c0_i32_1 = arith.constant 0 : i32
    return %c0_i32, %c0_i32_0 : i32, i32
  }
  func.func @transform_3(%arg0: i32) -> (i32, i32) {
    %c0_i32 = arith.constant 0 : i32
    %c0_i32_0 = arith.constant 0 : i32
    %c0_i32_1 = arith.constant 0 : i32
    return %c0_i32, %c0_i32_0 : i32, i32
  }
  func.func @transform_4(%arg0: i32) -> (i32, i32) {
    %c0_i32 = arith.constant 0 : i32
    %c0_i32_0 = arith.constant 0 : i32
    %c0_i32_1 = arith.constant 0 : i32
    return %c0_i32, %c0_i32_0 : i32, i32
  }
  func.func @transform_5(%arg0: i32) -> (i32, i32) {
    %c0_i32 = arith.constant 0 : i32
    %c0_i32_0 = arith.constant 0 : i32
    %c0_i32_1 = arith.constant 0 : i32
    return %c0_i32, %c0_i32_0 : i32, i32
  }
  func.func @transform_6(%arg0: i32) -> (i32, i32) {
    %c0_i32 = arith.constant 0 : i32
    %c0_i32_0 = arith.constant 0 : i32
    %c0_i32_1 = arith.constant 0 : i32
    return %c0_i32, %c0_i32_0 : i32, i32
  }
  func.func @transform_7(%arg0: i32) -> (i32, i32) {
    %c0_i32 = arith.constant 0 : i32
    %c0_i32_0 = arith.constant 0 : i32
    return %arg0, %c0_i32 : i32, i32
  }
}

</mosaic_0001>

<llo_original>
// kernel: tpu_custom_call.1
$region0: #{tpu_custom_call.1}
  #allocation0 [shape = 'u32[]', space=smem, size = 0x4, offset = 0x4, fixed_abs, tag = 'smem constant byte address 0x4 - core index']
  #allocation1 [shape = 'u32[72,128]{1,0:T(1,128)}', space=vmem, size = 0x9000, scoped, tag = 'internal scratch']
  %s0 = inlined_call_operand.hbm [shape: f32[10,1280], index: 0, kind: input, shape index: {}]
  %s1 = inlined_call_operand.hbm [shape: bf16[1280,256], index: 1, kind: input, shape index: {}]
  %s2 = inlined_call_operand.hbm [shape: f32[1,256], index: 2, kind: input, shape index: {}]
  %s3 = inlined_call_operand.hbm [shape: bf16[256,128], index: 3, kind: input, shape index: {}]
  %s4 = inlined_call_operand.vmem [shape: f32[1,128], index: 4, kind: input, shape index: {}]
  %s5 = inlined_call_operand.hbm [shape: bf16[128,128], index: 5, kind: input, shape index: {}]
  %s6 = inlined_call_operand.vmem [shape: f32[1,128], index: 6, kind: input, shape index: {}]
  %s7 = inlined_call_operand.hbm [shape: bf16[10,128], index: 7, kind: output, shape index: {}]
  %s8 = sld [smem:[#allocation0]]
  $region58: #{tpu_custom_call.1} parent=0
    _
  %s10 = ssub.s32 1, %s8
  %s11 = scalar_select 0, %s10, %s8
  $region1: #{tpu_custom_call.1} parent=0
    #allocation2 [shape = 'u8[81920]{0}', space=vmem, size = 0x14000, scoped, tag = 'input window, operand 0, single buffered']
    #allocation3 [shape = 's32[1]{0}', space=sflag, size = 0x4, scoped, tag = 'scoped memory for tpu_custom_call.1']
    #allocation4 [shape = 's32[1]{0}', space=sflag, size = 0x4, scoped, tag = 'scoped memory for tpu_custom_call.1']
    #allocation5 [shape = 'u8[655360]{0}', space=vmem, size = 0xa0000, scoped, tag = 'input window, operand 1, single buffered']
    #allocation6 [shape = 's32[1]{0}', space=sflag, size = 0x4, scoped, tag = 'scoped memory for tpu_custom_call.1']
    #allocation7 [shape = 'u8[1024]{0}', space=vmem, size = 0x400, scoped, tag = 'input window, operand 2, single buffered']
    #allocation8 [shape = 'u8[65536]{0}', space=vmem, size = 0x10000, scoped, tag = 'input window, operand 3, single buffered']
    #allocation9 [shape = 's32[1]{0}', space=sflag, size = 0x4, scoped, tag = 'scoped memory for tpu_custom_call.1']
    #allocation10 [shape = 'u8[32768]{0}', space=vmem, size = 0x8000, scoped, tag = 'input window, operand 5, single buffered']
    #allocation11 [shape = 'u8[4096]{0}', space=vmem, size = 0x1000, scoped, tag = 'output window, operand 0, single buffered']
    %12 = vsyncpa [#allocation3], 0
    %13 = vsyncpa [#allocation6], 0
    %14 = vsyncpa [#allocation9], 0
    %15 = vsyncpa [#allocation4], 0
    // Predicated region
    $region2: #{tpu_custom_call.1} parent=1 // pred_check
      _
    $region3: #{tpu_custom_call.1} parent=1 // pred_check_branch
      %17 = sbr.rel (0) target = $region5
    $region4: #{tpu_custom_call.1} parent=1 // pred_region
      %19 = vsyncadd [#allocation3], 0
      %s20 = sshll.u32 %s0, 4
      %s21 = int_to_ptr.hbm [resolvable:$true] %s20
      %s22 = sshll.u32 [#allocation2], 4
      %s23 = int_to_ptr.vmem [resolvable:$true] %s22
      %28 = dma.hbm_to_vmem [thread:$0]  %s21, 2560, %s23, [#allocation3], 1280, 1280, 80
    $region5: #{tpu_custom_call.1} parent=1 // pred_fallthru
      _
    // Predicated region
    $region6: #{tpu_custom_call.1} parent=1 // pred_check
      _
    $region7: #{tpu_custom_call.1} parent=1 // pred_check_branch
      %30 = sbr.rel (0) target = $region9
    $region8: #{tpu_custom_call.1} parent=1 // pred_region
      %32 = vsyncadd [#allocation6], 0
      %s33 = sshll.u32 %s1, 4
      %s34 = int_to_ptr.hbm [resolvable:$true] %s33
      %s35 = sshll.u32 [#allocation5], 4
      %s36 = int_to_ptr.vmem [resolvable:$true] %s35
      %41 = dma.hbm_to_vmem [thread:$0]  %s34, 20480, %s36, [#allocation6], 128, 128, 8
    $region9: #{tpu_custom_call.1} parent=1 // pred_fallthru
      _
    // Predicated region
    $region10: #{tpu_custom_call.1} parent=1 // pred_check
      _
    $region11: #{tpu_custom_call.1} parent=1 // pred_check_branch
      %43 = sbr.rel (0) target = $region13
    $region12: #{tpu_custom_call.1} parent=1 // pred_region
      %45 = vsyncadd [#allocation6], 0
      %s47 = sshll.u32 %s2, 4
      %s48 = int_to_ptr.hbm [resolvable:$true] %s47
      %s49 = sshll.u32 [#allocation7], 4
      %s50 = int_to_ptr.vmem [resolvable:$true] %s49
      %52 = dma.hbm_to_vmem [thread:$0]  %s48, 32, %s50, [#allocation6]
    $region13: #{tpu_custom_call.1} parent=1 // pred_fallthru
      _
    // Predicated region
    $region14: #{tpu_custom_call.1} parent=1 // pred_check
      _
    $region15: #{tpu_custom_call.1} parent=1 // pred_check_branch
      %54 = sbr.rel (0) target = $region17
    $region16: #{tpu_custom_call.1} parent=1 // pred_region
      %56 = vsyncadd [#allocation9], 0
      %s57 = sshll.u32 %s3, 4
      %s58 = int_to_ptr.hbm [resolvable:$true] %s57
      %s59 = sshll.u32 [#allocation8], 4
      %s60 = int_to_ptr.vmem [resolvable:$true] %s59
      %65 = dma.hbm_to_vmem [thread:$0]  %s58, 2048, %s60, [#allocation9], 64, 64, 4
    $region17: #{tpu_custom_call.1} parent=1 // pred_fallthru
      _
    // Predicated region
    $region18: #{tpu_custom_call.1} parent=1 // pred_check
      _
    $region19: #{tpu_custom_call.1} parent=1 // pred_check_branch
      %67 = sbr.rel (0) target = $region21
    $region20: #{tpu_custom_call.1} parent=1 // pred_region
      _
    $region21: #{tpu_custom_call.1} parent=1 // pred_fallthru
      _
    // Predicated region
    $region22: #{tpu_custom_call.1} parent=1 // pred_check
      _
    $region23: #{tpu_custom_call.1} parent=1 // pred_check_branch
      %69 = sbr.rel (0) target = $region25
    $region24: #{tpu_custom_call.1} parent=1 // pred_region
      %71 = vsyncadd [#allocation9], 0
      %s72 = sshll.u32 %s5, 4
      %s73 = int_to_ptr.hbm [resolvable:$true] %s72
      %s74 = sshll.u32 [#allocation10], 4
      %s75 = int_to_ptr.vmem [resolvable:$true] %s74
      %80 = dma.hbm_to_vmem [thread:$0]  %s73, 1024, %s75, [#allocation9], 64, 64, 4
    $region25: #{tpu_custom_call.1} parent=1 // pred_fallthru
      _
    // Predicated region
    $region26: #{tpu_custom_call.1} parent=1 // pred_check
      _
    $region27: #{tpu_custom_call.1} parent=1 // pred_check_branch
      %82 = sbr.rel (0) target = $region29
    $region28: #{tpu_custom_call.1} parent=1 // pred_region
      _
    $region29: #{tpu_custom_call.1} parent=1 // pred_fallthru
      _
    // Predicated region
    $region30: #{tpu_custom_call.1} parent=1 // pred_check
      _
    $region31: #{tpu_custom_call.1} parent=1 // pred_check_branch
      %84 = sbr.rel (0) target = $region33
    $region32: #{tpu_custom_call.1} parent=1 // pred_region
      %86 = dma.done [#allocation3], 2560
    $region33: #{tpu_custom_call.1} parent=1 // pred_fallthru
      _
    // Predicated region
    $region34: #{tpu_custom_call.1} parent=1 // pred_check
      _
    $region35: #{tpu_custom_call.1} parent=1 // pred_check_branch
      %88 = sbr.rel (0) target = $region37
    $region36: #{tpu_custom_call.1} parent=1 // pred_region
      %90 = dma.done [#allocation6], 20480
    $region37: #{tpu_custom_call.1} parent=1 // pred_fallthru
      _
    // Predicated region
    $region38: #{tpu_custom_call.1} parent=1 // pred_check
      _
    $region39: #{tpu_custom_call.1} parent=1 // pred_check_branch
      %92 = sbr.rel (0) target = $region41
    $region40: #{tpu_custom_call.1} parent=1 // pred_region
      %94 = dma.done [#allocation6], 32
    $region41: #{tpu_custom_call.1} parent=1 // pred_fallthru
      _
    // Predicated region
    $region42: #{tpu_custom_call.1} parent=1 // pred_check
      _
    $region43: #{tpu_custom_call.1} parent=1 // pred_check_branch
      %96 = sbr.rel (0) target = $region45
    $region44: #{tpu_custom_call.1} parent=1 // pred_region
      %98 = dma.done [#allocation9], 2048
    $region45: #{tpu_custom_call.1} parent=1 // pred_fallthru
      _
    // Predicated region
    $region46: #{tpu_custom_call.1} parent=1 // pred_check
      _
    $region47: #{tpu_custom_call.1} parent=1 // pred_check_branch
      %100 = sbr.rel (0) target = $region49
    $region48: #{tpu_custom_call.1} parent=1 // pred_region
      %102 = dma.done [#allocation9], 1024
    $region49: #{tpu_custom_call.1} parent=1 // pred_fallthru
      _
    %v103 = vld [vmem:[#allocation2] sm:$0xff]
    %v104 = vld [vmem:[#allocation2 + $0x8] sm:$0xff]
    %v105 = vld [vmem:[#allocation2 + $0x10] sm:$0xff]
    %v106 = vld [vmem:[#allocation2 + $0x18] sm:$0xff]
    %v107 = vld [vmem:[#allocation2 + $0x20] sm:$0xff]
    %v108 = vld [vmem:[#allocation2 + $0x28] sm:$0xff]
    %v109 = vld [vmem:[#allocation2 + $0x30] sm:$0xff]
    %v110 = vld [vmem:[#allocation2 + $0x38] sm:$0xff]
    %v111 = vld [vmem:[#allocation2 + $0x40] sm:$0xff]
    %v112 = vld [vmem:[#allocation2 + $0x48] sm:$0xff]
    %v113 = vld [vmem:[#allocation2 + $0x50] sm:$0xff]
    %v114 = vld [vmem:[#allocation2 + $0x58] sm:$0xff]
    %v115 = vld [vmem:[#allocation2 + $0x60] sm:$0xff]
    %v116 = vld [vmem:[#allocation2 + $0x68] sm:$0xff]
    %v117 = vld [vmem:[#allocation2 + $0x70] sm:$0xff]
    %v118 = vld [vmem:[#allocation2 + $0x78] sm:$0xff]
    %v119 = vld [vmem:[#allocation2 + $0x80] sm:$0xff]
    %v120 = vld [vmem:[#allocation2 + $0x88] sm:$0xff]
    %v121 = vld [vmem:[#allocation2 + $0x90] sm:$0xff]
    %v122 = vld [vmem:[#allocation2 + $0x98] sm:$0xff]
    %v123 = vpack.c.bf16 %v113, %v103
    %v124 = vpack.c.bf16 %v114, %v104
    %v125 = vpack.c.bf16 %v115, %v105
    %v126 = vpack.c.bf16 %v116, %v106
    %v127 = vpack.c.bf16 %v117, %v107
    %v128 = vpack.c.bf16 %v118, %v108
    %v129 = vpack.c.bf16 %v119, %v109
    %v130 = vpack.c.bf16 %v120, %v110
    %v131 = vpack.c.bf16 %v121, %v111
    %v132 = vpack.c.bf16 %v122, %v112
    %v133 = vld [vmem:[#allocation5] sm:$0xff]
    %v134 = vld [vmem:[#allocation5 + $0x8] sm:$0xff]
    %v135 = vld [vmem:[#allocation5 + $0x10] sm:$0xff]
    %v136 = vld [vmem:[#allocation5 + $0x18] sm:$0xff]
    %v137 = vld [vmem:[#allocation5 + $0x20] sm:$0xff]
    %v138 = vld [vmem:[#allocation5 + $0x28] sm:$0xff]
    %v139 = vld [vmem:[#allocation5 + $0x30] sm:$0xff]
    %v140 = vld [vmem:[#allocation5 + $0x38] sm:$0xff]
    %v141 = vld [vmem:[#allocation5 + $0x40] sm:$0xff]
    %v142 = vld [vmem:[#allocation5 + $0x48] sm:$0xff]
    %v143 = vld [vmem:[#allocation5 + $0x50] sm:$0xff]
    %v144 = vld [vmem:[#allocation5 + $0x58] sm:$0xff]
    %v145 = vld [vmem:[#allocation5 + $0x60] sm:$0xff]
    %v146 = vld [vmem:[#allocation5 + $0x68] sm:$0xff]
    %v147 = vld [vmem:[#allocation5 + $0x70] sm:$0xff]
    %v148 = vld [vmem:[#allocation5 + $0x78] sm:$0xff]
    %v149 = vld [vmem:[#allocation5 + $0x80] sm:$0xff]
    %v150 = vld [vmem:[#allocation5 + $0x88] sm:$0xff]
    %v151 = vld [vmem:[#allocation5 + $0x90] sm:$0xff]
    %v152 = vld [vmem:[#allocation5 + $0x98] sm:$0xff]
    %v153 = vld [vmem:[#allocation5 + $0xa0] sm:$0xff]
    %v154 = vld [vmem:[#allocation5 + $0xa8] sm:$0xff]
    %v155 = vld [vmem:[#allocation5 + $0xb0] sm:$0xff]
    %v156 = vld [vmem:[#allocation5 + $0xb8] sm:$0xff]
    %v157 = vld [vmem:[#allocation5 + $0xc0] sm:$0xff]
    %v158 = vld [vmem:[#allocation5 + $0xc8] sm:$0xff]
    %v159 = vld [vmem:[#allocation5 + $0xd0] sm:$0xff]
    %v160 = vld [vmem:[#allocation5 + $0xd8] sm:$0xff]
    %v161 = vld [vmem:[#allocation5 + $0xe0] sm:$0xff]
    %v162 = vld [vmem:[#allocation5 + $0xe8] sm:$0xff]
    %v163 = vld [vmem:[#allocation5 + $0xf0] sm:$0xff]
    %v164 = vld [vmem:[#allocation5 + $0xf8] sm:$0xff]
    %v165 = vld [vmem:[#allocation5 + $0x100] sm:$0xff]
    %v166 = vld [vmem:[#allocation5 + $0x108] sm:$0xff]
    %v167 = vld [vmem:[#allocation5 + $0x110] sm:$0xff]
    %v168 = vld [vmem:[#allocation5 + $0x118] sm:$0xff]
    %v169 = vld [vmem:[#allocation5 + $0x120] sm:$0xff]
    %v170 = vld [vmem:[#allocation5 + $0x128] sm:$0xff]
    %v171 = vld [vmem:[#allocation5 + $0x130] sm:$0xff]
    %v172 = vld [vmem:[#allocation5 + $0x138] sm:$0xff]
    %v173 = vld [vmem:[#allocation5 + $0x140] sm:$0xff]
    %v174 = vld [vmem:[#allocation5 + $0x148] sm:$0xff]
    %v175 = vld [vmem:[#allocation5 + $0x150] sm:$0xff]
    %v176 = vld [vmem:[#allocation5 + $0x158] sm:$0xff]
    %v177 = vld [vmem:[#allocation5 + $0x160] sm:$0xff]
    %v178 = vld [vmem:[#allocation5 + $0x168] sm:$0xff]
    %v179 = vld [vmem:[#allocation5 + $0x170] sm:$0xff]
    %v180 = vld [vmem:[#allocation5 + $0x178] sm:$0xff]
    %v181 = vld [vmem:[#allocation5 + $0x180] sm:$0xff]
    %v182 = vld [vmem:[#allocation5 + $0x188] sm:$0xff]
    %v183 = vld [vmem:[#allocation5 + $0x190] sm:$0xff]
    %v184 = vld [vmem:[#allocation5 + $0x198] sm:$0xff]
    %v185 = vld [vmem:[#allocation5 + $0x1a0] sm:$0xff]
    %v186 = vld [vmem:[#allocation5 + $0x1a8] sm:$0xff]
    %v187 = vld [vmem:[#allocation5 + $0x1b0] sm:$0xff]
    %v188 = vld [vmem:[#allocation5 + $0x1b8] sm:$0xff]
    %v189 = vld [vmem:[#allocation5 + $0x1c0] sm:$0xff]
    %v190 = vld [vmem:[#allocation5 + $0x1c8] sm:$0xff]
    %v191 = vld [vmem:[#allocation5 + $0x1d0] sm:$0xff]
    %v192 = vld [vmem:[#allocation5 + $0x1d8] sm:$0xff]
    %v193 = vld [vmem:[#allocation5 + $0x1e0] sm:$0xff]
    %v194 = vld [vmem:[#allocation5 + $0x1e8] sm:$0xff]
    %v195 = vld [vmem:[#allocation5 + $0x1f0] sm:$0xff]
    %v196 = vld [vmem:[#allocation5 + $0x1f8] sm:$0xff]
    %v197 = vld [vmem:[#allocation5 + $0x200] sm:$0xff]
    %v198 = vld [vmem:[#allocation5 + $0x208] sm:$0xff]
    %v199 = vld [vmem:[#allocation5 + $0x210] sm:$0xff]
    %v200 = vld [vmem:[#allocation5 + $0x218] sm:$0xff]
    %v201 = vld [vmem:[#allocation5 + $0x220] sm:$0xff]
    %v202 = vld [vmem:[#allocation5 + $0x228] sm:$0xff]
    %v203 = vld [vmem:[#allocation5 + $0x230] sm:$0xff]
    %v204 = vld [vmem:[#allocation5 + $0x238] sm:$0xff]
    %v205 = vld [vmem:[#allocation5 + $0x240] sm:$0xff]
    %v206 = vld [vmem:[#allocation5 + $0x248] sm:$0xff]
    %v207 = vld [vmem:[#allocation5 + $0x250] sm:$0xff]
    %v208 = vld [vmem:[#allocation5 + $0x258] sm:$0xff]
    %v209 = vld [vmem:[#allocation5 + $0x260] sm:$0xff]
    %v210 = vld [vmem:[#allocation5 + $0x268] sm:$0xff]
    %v211 = vld [vmem:[#allocation5 + $0x270] sm:$0xff]
    %v212 = vld [vmem:[#allocation5 + $0x278] sm:$0xff]
    %v213 = vld [vmem:[#allocation5 + $0x280] sm:$0xff]
    %v214 = vld [vmem:[#allocation5 + $0x288] sm:$0xff]
    %v215 = vld [vmem:[#allocation5 + $0x290] sm:$0xff]
    %v216 = vld [vmem:[#allocation5 + $0x298] sm:$0xff]
    %v217 = vld [vmem:[#allocation5 + $0x2a0] sm:$0xff]
    %v218 = vld [vmem:[#allocation5 + $0x2a8] sm:$0xff]
    %v219 = vld [vmem:[#allocation5 + $0x2b0] sm:$0xff]
    %v220 = vld [vmem:[#allocation5 + $0x2b8] sm:$0xff]
    %v221 = vld [vmem:[#allocation5 + $0x2c0] sm:$0xff]
    %v222 = vld [vmem:[#allocation5 + $0x2c8] sm:$0xff]
    %v223 = vld [vmem:[#allocation5 + $0x2d0] sm:$0xff]
    %v224 = vld [vmem:[#allocation5 + $0x2d8] sm:$0xff]
    %v225 = vld [vmem:[#allocation5 + $0x2e0] sm:$0xff]
    %v226 = vld [vmem:[#allocation5 + $0x2e8] sm:$0xff]
    %v227 = vld [vmem:[#allocation5 + $0x2f0] sm:$0xff]
    %v228 = vld [vmem:[#allocation5 + $0x2f8] sm:$0xff]
    %v229 = vld [vmem:[#allocation5 + $0x300] sm:$0xff]
    %v230 = vld [vmem:[#allocation5 + $0x308] sm:$0xff]
    %v231 = vld [vmem:[#allocation5 + $0x310] sm:$0xff]
    %v232 = vld [vmem:[#allocation5 + $0x318] sm:$0xff]
    %v233 = vld [vmem:[#allocation5 + $0x320] sm:$0xff]
    %v234 = vld [vmem:[#allocation5 + $0x328] sm:$0xff]
    %v235 = vld [vmem:[#allocation5 + $0x330] sm:$0xff]
    %v236 = vld [vmem:[#allocation5 + $0x338] sm:$0xff]
    %v237 = vld [vmem:[#allocation5 + $0x340] sm:$0xff]
    %v238 = vld [vmem:[#allocation5 + $0x348] sm:$0xff]
    %v239 = vld [vmem:[#allocation5 + $0x350] sm:$0xff]
    %v240 = vld [vmem:[#allocation5 + $0x358] sm:$0xff]
    %v241 = vld [vmem:[#allocation5 + $0x360] sm:$0xff]
    %v242 = vld [vmem:[#allocation5 + $0x368] sm:$0xff]
    %v243 = vld [vmem:[#allocation5 + $0x370] sm:$0xff]
    %v244 = vld [vmem:[#allocation5 + $0x378] sm:$0xff]
    %v245 = vld [vmem:[#allocation5 + $0x380] sm:$0xff]
    %v246 = vld [vmem:[#allocation5 + $0x388] sm:$0xff]
    %v247 = vld [vmem:[#allocation5 + $0x390] sm:$0xff]
    %v248 = vld [vmem:[#allocation5 + $0x398] sm:$0xff]
    %v249 = vld [vmem:[#allocation5 + $0x3a0] sm:$0xff]
    %v250 = vld [vmem:[#allocation5 + $0x3a8] sm:$0xff]
    %v251 = vld [vmem:[#allocation5 + $0x3b0] sm:$0xff]
    %v252 = vld [vmem:[#allocation5 + $0x3b8] sm:$0xff]
    %v253 = vld [vmem:[#allocation5 + $0x3c0] sm:$0xff]
    %v254 = vld [vmem:[#allocation5 + $0x3c8] sm:$0xff]
    %v255 = vld [vmem:[#allocation5 + $0x3d0] sm:$0xff]
    %v256 = vld [vmem:[#allocation5 + $0x3d8] sm:$0xff]
    %v257 = vld [vmem:[#allocation5 + $0x3e0] sm:$0xff]
    %v258 = vld [vmem:[#allocation5 + $0x3e8] sm:$0xff]
    %v259 = vld [vmem:[#allocation5 + $0x3f0] sm:$0xff]
    %v260 = vld [vmem:[#allocation5 + $0x3f8] sm:$0xff]
    %v261 = vld [vmem:[#allocation5 + $0x400] sm:$0xff]
    %v262 = vld [vmem:[#allocation5 + $0x408] sm:$0xff]
    %v263 = vld [vmem:[#allocation5 + $0x410] sm:$0xff]
    %v264 = vld [vmem:[#allocation5 + $0x418] sm:$0xff]
    %v265 = vld [vmem:[#allocation5 + $0x420] sm:$0xff]
    %v266 = vld [vmem:[#allocation5 + $0x428] sm:$0xff]
    %v267 = vld [vmem:[#allocation5 + $0x430] sm:$0xff]
    %v268 = vld [vmem:[#allocation5 + $0x438] sm:$0xff]
    %v269 = vld [vmem:[#allocation5 + $0x440] sm:$0xff]
    %v270 = vld [vmem:[#allocation5 + $0x448] sm:$0xff]
    %v271 = vld [vmem:[#allocation5 + $0x450] sm:$0xff]
    %v272 = vld [vmem:[#allocation5 + $0x458] sm:$0xff]
    %v273 = vld [vmem:[#allocation5 + $0x460] sm:$0xff]
    %v274 = vld [vmem:[#allocation5 + $0x468] sm:$0xff]
    %v275 = vld [vmem:[#allocation5 + $0x470] sm:$0xff]
    %v276 = vld [vmem:[#allocation5 + $0x478] sm:$0xff]
    %v277 = vld [vmem:[#allocation5 + $0x480] sm:$0xff]
    %v278 = vld [vmem:[#allocation5 + $0x488] sm:$0xff]
    %v279 = vld [vmem:[#allocation5 + $0x490] sm:$0xff]
    %v280 = vld [vmem:[#allocation5 + $0x498] sm:$0xff]
    %v281 = vld [vmem:[#allocation5 + $0x4a0] sm:$0xff]
    %v282 = vld [vmem:[#allocation5 + $0x4a8] sm:$0xff]
    %v283 = vld [vmem:[#allocation5 + $0x4b0] sm:$0xff]
    %v284 = vld [vmem:[#allocation5 + $0x4b8] sm:$0xff]
    %v285 = vld [vmem:[#allocation5 + $0x4c0] sm:$0xff]
    %v286 = vld [vmem:[#allocation5 + $0x4c8] sm:$0xff]
    %v287 = vld [vmem:[#allocation5 + $0x4d0] sm:$0xff]
    %v288 = vld [vmem:[#allocation5 + $0x4d8] sm:$0xff]
    %v289 = vld [vmem:[#allocation5 + $0x4e0] sm:$0xff]
    %v290 = vld [vmem:[#allocation5 + $0x4e8] sm:$0xff]
    %v291 = vld [vmem:[#allocation5 + $0x4f0] sm:$0xff]
    %v292 = vld [vmem:[#allocation5 + $0x4f8] sm:$0xff]
    %v293 = vld [vmem:[#allocation7] sm:$0x3]
    %v295 = vperm.slane %v293, 0
    %v296 = vperm.slane %v293, 1
    %v459 = vunpack.c.l.b16 %v133
    %v460 = vunpack.c.h.b16 %v133
    %v461 = vunpack.c.l.b16 %v134
    %v462 = vunpack.c.h.b16 %v134
    %v463 = vunpack.c.l.b16 %v135
    %v464 = vunpack.c.h.b16 %v135
    %v465 = vunpack.c.l.b16 %v136
    %v466 = vunpack.c.h.b16 %v136
    %v467 = vunpack.c.l.b16 %v137
    %v468 = vunpack.c.h.b16 %v137
    %v469 = vunpack.c.l.b16 %v138
    %v470 = vunpack.c.h.b16 %v138
    %v471 = vunpack.c.l.b16 %v139
    %v472 = vunpack.c.h.b16 %v139
    %v473 = vunpack.c.l.b16 %v140
    %v474 = vunpack.c.h.b16 %v140
    %v475 = vunpack.c.l.b16 %v141
    %v476 = vunpack.c.h.b16 %v141
    %v477 = vunpack.c.l.b16 %v142
    %v478 = vunpack.c.h.b16 %v142
    %v479 = vunpack.c.l.b16 %v143
    %v480 = vunpack.c.h.b16 %v143
    %v481 = vunpack.c.l.b16 %v144
    %v482 = vunpack.c.h.b16 %v144
    %v483 = vunpack.c.l.b16 %v145
    %v484 = vunpack.c.h.b16 %v145
    %v485 = vunpack.c.l.b16 %v146
    %v486 = vunpack.c.h.b16 %v146
    %v487 = vunpack.c.l.b16 %v147
    %v488 = vunpack.c.h.b16 %v147
    %v489 = vunpack.c.l.b16 %v148
    %v490 = vunpack.c.h.b16 %v148
    %v491 = vunpack.c.l.b16 %v149
    %v492 = vunpack.c.h.b16 %v149
    %v493 = vunpack.c.l.b16 %v150
    %v494 = vunpack.c.h.b16 %v150
    %v495 = vunpack.c.l.b16 %v151
    %v496 = vunpack.c.h.b16 %v151
    %v497 = vunpack.c.l.b16 %v152
    %v498 = vunpack.c.h.b16 %v152
    %v499 = vunpack.c.l.b16 %v153
    %v500 = vunpack.c.h.b16 %v153
    %v501 = vunpack.c.l.b16 %v154
    %v502 = vunpack.c.h.b16 %v154
    %v503 = vunpack.c.l.b16 %v155
    %v504 = vunpack.c.h.b16 %v155
    %v505 = vunpack.c.l.b16 %v156
    %v506 = vunpack.c.h.b16 %v156
    %v507 = vunpack.c.l.b16 %v157
    %v508 = vunpack.c.h.b16 %v157
    %v509 = vunpack.c.l.b16 %v158
    %v510 = vunpack.c.h.b16 %v158
    %v511 = vunpack.c.l.b16 %v159
    %v512 = vunpack.c.h.b16 %v159
    %v513 = vunpack.c.l.b16 %v160
    %v514 = vunpack.c.h.b16 %v160
    %v515 = vunpack.c.l.b16 %v161
    %v516 = vunpack.c.h.b16 %v161
    %v517 = vunpack.c.l.b16 %v162
    %v518 = vunpack.c.h.b16 %v162
    %v519 = vunpack.c.l.b16 %v163
    %v520 = vunpack.c.h.b16 %v163
    %v521 = vunpack.c.l.b16 %v164
    %v522 = vunpack.c.h.b16 %v164
    %v523 = vunpack.c.l.b16 %v165
    %v524 = vunpack.c.h.b16 %v165
    %v525 = vunpack.c.l.b16 %v166
    %v526 = vunpack.c.h.b16 %v166
    %v527 = vunpack.c.l.b16 %v167
    %v528 = vunpack.c.h.b16 %v167
    %v529 = vunpack.c.l.b16 %v168
    %v530 = vunpack.c.h.b16 %v168
    %v531 = vunpack.c.l.b16 %v169
    %v532 = vunpack.c.h.b16 %v169
    %v533 = vunpack.c.l.b16 %v170
    %v534 = vunpack.c.h.b16 %v170
    %v535 = vunpack.c.l.b16 %v171
    %v536 = vunpack.c.h.b16 %v171
    %v537 = vunpack.c.l.b16 %v172
    %v538 = vunpack.c.h.b16 %v172
    %v539 = vunpack.c.l.b16 %v173
    %v540 = vunpack.c.h.b16 %v173
    %v541 = vunpack.c.l.b16 %v174
    %v542 = vunpack.c.h.b16 %v174
    %v543 = vunpack.c.l.b16 %v175
    %v544 = vunpack.c.h.b16 %v175
    %v545 = vunpack.c.l.b16 %v176
    %v546 = vunpack.c.h.b16 %v176
    %v547 = vunpack.c.l.b16 %v177
    %v548 = vunpack.c.h.b16 %v177
    %v549 = vunpack.c.l.b16 %v178
    %v550 = vunpack.c.h.b16 %v178
    %v551 = vunpack.c.l.b16 %v179
    %v552 = vunpack.c.h.b16 %v179
    %v553 = vunpack.c.l.b16 %v180
    %v554 = vunpack.c.h.b16 %v180
    %v555 = vunpack.c.l.b16 %v181
    %v556 = vunpack.c.h.b16 %v181
    %v557 = vunpack.c.l.b16 %v182
    %v558 = vunpack.c.h.b16 %v182
    %v559 = vunpack.c.l.b16 %v183
    %v560 = vunpack.c.h.b16 %v183
    %v561 = vunpack.c.l.b16 %v184
    %v562 = vunpack.c.h.b16 %v184
    %v563 = vunpack.c.l.b16 %v185
    %v564 = vunpack.c.h.b16 %v185
    %v565 = vunpack.c.l.b16 %v186
    %v566 = vunpack.c.h.b16 %v186
    %v567 = vunpack.c.l.b16 %v187
    %v568 = vunpack.c.h.b16 %v187
    %v569 = vunpack.c.l.b16 %v188
    %v570 = vunpack.c.h.b16 %v188
    %v571 = vunpack.c.l.b16 %v189
    %v572 = vunpack.c.h.b16 %v189
    %v573 = vunpack.c.l.b16 %v190
    %v574 = vunpack.c.h.b16 %v190
    %v575 = vunpack.c.l.b16 %v191
    %v576 = vunpack.c.h.b16 %v191
    %v577 = vunpack.c.l.b16 %v192
    %v578 = vunpack.c.h.b16 %v192
    %v579 = vunpack.c.l.b16 %v193
    %v580 = vunpack.c.h.b16 %v193
    %v581 = vunpack.c.l.b16 %v194
    %v582 = vunpack.c.h.b16 %v194
    %v583 = vunpack.c.l.b16 %v195
    %v584 = vunpack.c.h.b16 %v195
    %v585 = vunpack.c.l.b16 %v196
    %v586 = vunpack.c.h.b16 %v196
    %v587 = vunpack.c.l.b16 %v197
    %v588 = vunpack.c.h.b16 %v197
    %v589 = vunpack.c.l.b16 %v198
    %v590 = vunpack.c.h.b16 %v198
    %v591 = vunpack.c.l.b16 %v199
    %v592 = vunpack.c.h.b16 %v199
    %v593 = vunpack.c.l.b16 %v200
    %v594 = vunpack.c.h.b16 %v200
    %v595 = vunpack.c.l.b16 %v201
    %v596 = vunpack.c.h.b16 %v201
    %v597 = vunpack.c.l.b16 %v202
    %v598 = vunpack.c.h.b16 %v202
    %v599 = vunpack.c.l.b16 %v203
    %v600 = vunpack.c.h.b16 %v203
    %v601 = vunpack.c.l.b16 %v204
    %v602 = vunpack.c.h.b16 %v204
    %v603 = vunpack.c.l.b16 %v205
    %v604 = vunpack.c.h.b16 %v205
    %v605 = vunpack.c.l.b16 %v206
    %v606 = vunpack.c.h.b16 %v206
    %v607 = vunpack.c.l.b16 %v207
    %v608 = vunpack.c.h.b16 %v207
    %v609 = vunpack.c.l.b16 %v208
    %v610 = vunpack.c.h.b16 %v208
    %v611 = vunpack.c.l.b16 %v209
    %v612 = vunpack.c.h.b16 %v209
    %v613 = vunpack.c.l.b16 %v210
    %v614 = vunpack.c.h.b16 %v210
    %v615 = vunpack.c.l.b16 %v211
    %v616 = vunpack.c.h.b16 %v211
    %v617 = vunpack.c.l.b16 %v212
    %v618 = vunpack.c.h.b16 %v212
    %v619 = vunpack.c.l.b16 %v213
    %v620 = vunpack.c.h.b16 %v213
    %v621 = vunpack.c.l.b16 %v214
    %v622 = vunpack.c.h.b16 %v214
    %v623 = vunpack.c.l.b16 %v215
    %v624 = vunpack.c.h.b16 %v215
    %v625 = vunpack.c.l.b16 %v216
    %v626 = vunpack.c.h.b16 %v216
    %v627 = vunpack.c.l.b16 %v217
    %v628 = vunpack.c.h.b16 %v217
    %v629 = vunpack.c.l.b16 %v218
    %v630 = vunpack.c.h.b16 %v218
    %v631 = vunpack.c.l.b16 %v219
    %v632 = vunpack.c.h.b16 %v219
    %v633 = vunpack.c.l.b16 %v220
    %v634 = vunpack.c.h.b16 %v220
    %v635 = vunpack.c.l.b16 %v221
    %v636 = vunpack.c.h.b16 %v221
    %v637 = vunpack.c.l.b16 %v222
    %v638 = vunpack.c.h.b16 %v222
    %v639 = vunpack.c.l.b16 %v223
    %v640 = vunpack.c.h.b16 %v223
    %v641 = vunpack.c.l.b16 %v224
    %v642 = vunpack.c.h.b16 %v224
    %v643 = vunpack.c.l.b16 %v225
    %v644 = vunpack.c.h.b16 %v225
    %v645 = vunpack.c.l.b16 %v226
    %v646 = vunpack.c.h.b16 %v226
    %v647 = vunpack.c.l.b16 %v227
    %v648 = vunpack.c.h.b16 %v227
    %v649 = vunpack.c.l.b16 %v228
    %v650 = vunpack.c.h.b16 %v228
    %v651 = vunpack.c.l.b16 %v229
    %v652 = vunpack.c.h.b16 %v229
    %v653 = vunpack.c.l.b16 %v230
    %v654 = vunpack.c.h.b16 %v230
    %v655 = vunpack.c.l.b16 %v231
    %v656 = vunpack.c.h.b16 %v231
    %v657 = vunpack.c.l.b16 %v232
    %v658 = vunpack.c.h.b16 %v232
    %v659 = vunpack.c.l.b16 %v233
    %v660 = vunpack.c.h.b16 %v233
    %v661 = vunpack.c.l.b16 %v234
    %v662 = vunpack.c.h.b16 %v234
    %v663 = vunpack.c.l.b16 %v235
    %v664 = vunpack.c.h.b16 %v235
    %v665 = vunpack.c.l.b16 %v236
    %v666 = vunpack.c.h.b16 %v236
    %v667 = vunpack.c.l.b16 %v237
    %v668 = vunpack.c.h.b16 %v237
    %v669 = vunpack.c.l.b16 %v238
    %v670 = vunpack.c.h.b16 %v238
    %v671 = vunpack.c.l.b16 %v239
    %v672 = vunpack.c.h.b16 %v239
    %v673 = vunpack.c.l.b16 %v240
    %v674 = vunpack.c.h.b16 %v240
    %v675 = vunpack.c.l.b16 %v241
    %v676 = vunpack.c.h.b16 %v241
    %v677 = vunpack.c.l.b16 %v242
    %v678 = vunpack.c.h.b16 %v242
    %v679 = vunpack.c.l.b16 %v243
    %v680 = vunpack.c.h.b16 %v243
    %v681 = vunpack.c.l.b16 %v244
    %v682 = vunpack.c.h.b16 %v244
    %v683 = vunpack.c.l.b16 %v245
    %v684 = vunpack.c.h.b16 %v245
    %v685 = vunpack.c.l.b16 %v246
    %v686 = vunpack.c.h.b16 %v246
    %v687 = vunpack.c.l.b16 %v247
    %v688 = vunpack.c.h.b16 %v247
    %v689 = vunpack.c.l.b16 %v248
    %v690 = vunpack.c.h.b16 %v248
    %v691 = vunpack.c.l.b16 %v249
    %v692 = vunpack.c.h.b16 %v249
    %v693 = vunpack.c.l.b16 %v250
    %v694 = vunpack.c.h.b16 %v250
    %v695 = vunpack.c.l.b16 %v251
    %v696 = vunpack.c.h.b16 %v251
    %v697 = vunpack.c.l.b16 %v252
    %v698 = vunpack.c.h.b16 %v252
    %v699 = vunpack.c.l.b16 %v253
    %v700 = vunpack.c.h.b16 %v253
    %v701 = vunpack.c.l.b16 %v254
    %v702 = vunpack.c.h.b16 %v254
    %v703 = vunpack.c.l.b16 %v255
    %v704 = vunpack.c.h.b16 %v255
    %v705 = vunpack.c.l.b16 %v256
    %v706 = vunpack.c.h.b16 %v256
    %v707 = vunpack.c.l.b16 %v257
    %v708 = vunpack.c.h.b16 %v257
    %v709 = vunpack.c.l.b16 %v258
    %v710 = vunpack.c.h.b16 %v258
    %v711 = vunpack.c.l.b16 %v259
    %v712 = vunpack.c.h.b16 %v259
    %v713 = vunpack.c.l.b16 %v260
    %v714 = vunpack.c.h.b16 %v260
    %v715 = vunpack.c.l.b16 %v261
    %v716 = vunpack.c.h.b16 %v261
    %v717 = vunpack.c.l.b16 %v262
    %v718 = vunpack.c.h.b16 %v262
    %v719 = vunpack.c.l.b16 %v263
    %v720 = vunpack.c.h.b16 %v263
    %v721 = vunpack.c.l.b16 %v264
    %v722 = vunpack.c.h.b16 %v264
    %v723 = vunpack.c.l.b16 %v265
    %v724 = vunpack.c.h.b16 %v265
    %v725 = vunpack.c.l.b16 %v266
    %v726 = vunpack.c.h.b16 %v266
    %v727 = vunpack.c.l.b16 %v267
    %v728 = vunpack.c.h.b16 %v267
    %v729 = vunpack.c.l.b16 %v268
    %v730 = vunpack.c.h.b16 %v268
    %v731 = vunpack.c.l.b16 %v269
    %v732 = vunpack.c.h.b16 %v269
    %v733 = vunpack.c.l.b16 %v270
    %v734 = vunpack.c.h.b16 %v270
    %v735 = vunpack.c.l.b16 %v271
    %v736 = vunpack.c.h.b16 %v271
    %v737 = vunpack.c.l.b16 %v272
    %v738 = vunpack.c.h.b16 %v272
    %v739 = vunpack.c.l.b16 %v273
    %v740 = vunpack.c.h.b16 %v273
    %v741 = vunpack.c.l.b16 %v274
    %v742 = vunpack.c.h.b16 %v274
    %v743 = vunpack.c.l.b16 %v275
    %v744 = vunpack.c.h.b16 %v275
    %v745 = vunpack.c.l.b16 %v276
    %v746 = vunpack.c.h.b16 %v276
    %v747 = vunpack.c.l.b16 %v277
    %v748 = vunpack.c.h.b16 %v277
    %v749 = vunpack.c.l.b16 %v278
    %v750 = vunpack.c.h.b16 %v278
    %v751 = vunpack.c.l.b16 %v279
    %v752 = vunpack.c.h.b16 %v279
    %v753 = vunpack.c.l.b16 %v280
    %v754 = vunpack.c.h.b16 %v280
    %v755 = vunpack.c.l.b16 %v281
    %v756 = vunpack.c.h.b16 %v281
    %v757 = vunpack.c.l.b16 %v282
    %v758 = vunpack.c.h.b16 %v282
    %v759 = vunpack.c.l.b16 %v283
    %v760 = vunpack.c.h.b16 %v283
    %v761 = vunpack.c.l.b16 %v284
    %v762 = vunpack.c.h.b16 %v284
    %v763 = vunpack.c.l.b16 %v285
    %v764 = vunpack.c.h.b16 %v285
    %v765 = vunpack.c.l.b16 %v286
    %v766 = vunpack.c.h.b16 %v286
    %v767 = vunpack.c.l.b16 %v287
    %v768 = vunpack.c.h.b16 %v287
    %v769 = vunpack.c.l.b16 %v288
    %v770 = vunpack.c.h.b16 %v288
    %v771 = vunpack.c.l.b16 %v289
    %v772 = vunpack.c.h.b16 %v289
    %v773 = vunpack.c.l.b16 %v290
    %v774 = vunpack.c.h.b16 %v290
    %v775 = vunpack.c.l.b16 %v291
    %v776 = vunpack.c.h.b16 %v291
    %v777 = vunpack.c.l.b16 %v292
    %v778 = vunpack.c.h.b16 %v292
    %v779 = vpack.c.b16 %v461, %v459
    %v780 = vpack.c.b16 %v462, %v460
    %v781 = vpack.c.b16 %v465, %v463
    %v782 = vpack.c.b16 %v466, %v464
    %v783 = vpack.c.b16 %v469, %v467
    %v784 = vpack.c.b16 %v470, %v468
    %v785 = vpack.c.b16 %v473, %v471
    %v786 = vpack.c.b16 %v474, %v472
    %v787 = vpack.c.b16 %v477, %v475
    %v788 = vpack.c.b16 %v478, %v476
    %v789 = vpack.c.b16 %v481, %v479
    %v790 = vpack.c.b16 %v482, %v480
    %v791 = vpack.c.b16 %v485, %v483
    %v792 = vpack.c.b16 %v486, %v484
    %v793 = vpack.c.b16 %v489, %v487
    %v794 = vpack.c.b16 %v490, %v488
    %v795 = vpack.c.b16 %v493, %v491
    %v796 = vpack.c.b16 %v494, %v492
    %v797 = vpack.c.b16 %v497, %v495
    %v798 = vpack.c.b16 %v498, %v496
    %v799 = vpack.c.b16 %v501, %v499
    %v800 = vpack.c.b16 %v502, %v500
    %v801 = vpack.c.b16 %v505, %v503
    %v802 = vpack.c.b16 %v506, %v504
    %v803 = vpack.c.b16 %v509, %v507
    %v804 = vpack.c.b16 %v510, %v508
    %v805 = vpack.c.b16 %v513, %v511
    %v806 = vpack.c.b16 %v514, %v512
    %v807 = vpack.c.b16 %v517, %v515
    %v808 = vpack.c.b16 %v518, %v516
    %v809 = vpack.c.b16 %v521, %v519
    %v810 = vpack.c.b16 %v522, %v520
    %v811 = vpack.c.b16 %v525, %v523
    %v812 = vpack.c.b16 %v526, %v524
    %v813 = vpack.c.b16 %v529, %v527
    %v814 = vpack.c.b16 %v530, %v528
    %v815 = vpack.c.b16 %v533, %v531
    %v816 = vpack.c.b16 %v534, %v532
    %v817 = vpack.c.b16 %v537, %v535
    %v818 = vpack.c.b16 %v538, %v536
    %v819 = vpack.c.b16 %v541, %v539
    %v820 = vpack.c.b16 %v542, %v540
    %v821 = vpack.c.b16 %v545, %v543
    %v822 = vpack.c.b16 %v546, %v544
    %v823 = vpack.c.b16 %v549, %v547
    %v824 = vpack.c.b16 %v550, %v548
    %v825 = vpack.c.b16 %v553, %v551
    %v826 = vpack.c.b16 %v554, %v552
    %v827 = vpack.c.b16 %v557, %v555
    %v828 = vpack.c.b16 %v558, %v556
    %v829 = vpack.c.b16 %v561, %v559
    %v830 = vpack.c.b16 %v562, %v560
    %v831 = vpack.c.b16 %v565, %v563
    %v832 = vpack.c.b16 %v566, %v564
    %v833 = vpack.c.b16 %v569, %v567
    %v834 = vpack.c.b16 %v570, %v568
    %v835 = vpack.c.b16 %v573, %v571
    %v836 = vpack.c.b16 %v574, %v572
    %v837 = vpack.c.b16 %v577, %v575
    %v838 = vpack.c.b16 %v578, %v576
    %v839 = vpack.c.b16 %v581, %v579
    %v840 = vpack.c.b16 %v582, %v580
    %v841 = vpack.c.b16 %v585, %v583
    %v842 = vpack.c.b16 %v586, %v584
    %v843 = vpack.c.b16 %v589, %v587
    %v844 = vpack.c.b16 %v590, %v588
    %v845 = vpack.c.b16 %v593, %v591
    %v846 = vpack.c.b16 %v594, %v592
    %v847 = vpack.c.b16 %v597, %v595
    %v848 = vpack.c.b16 %v598, %v596
    %v849 = vpack.c.b16 %v601, %v599
    %v850 = vpack.c.b16 %v602, %v600
    %v851 = vpack.c.b16 %v605, %v603
    %v852 = vpack.c.b16 %v606, %v604
    %v853 = vpack.c.b16 %v609, %v607
    %v854 = vpack.c.b16 %v610, %v608
    %v855 = vpack.c.b16 %v613, %v611
    %v856 = vpack.c.b16 %v614, %v612
    %v857 = vpack.c.b16 %v617, %v615
    %v858 = vpack.c.b16 %v618, %v616
    %v859 = vpack.c.b16 %v621, %v619
    %v860 = vpack.c.b16 %v622, %v620
    %v861 = vpack.c.b16 %v625, %v623
    %v862 = vpack.c.b16 %v626, %v624
    %v863 = vpack.c.b16 %v629, %v627
    %v864 = vpack.c.b16 %v630, %v628
    %v865 = vpack.c.b16 %v633, %v631
    %v866 = vpack.c.b16 %v634, %v632
    %v867 = vpack.c.b16 %v637, %v635
    %v868 = vpack.c.b16 %v638, %v636
    %v869 = vpack.c.b16 %v641, %v639
    %v870 = vpack.c.b16 %v642, %v640
    %v871 = vpack.c.b16 %v645, %v643
    %v872 = vpack.c.b16 %v646, %v644
    %v873 = vpack.c.b16 %v649, %v647
    %v874 = vpack.c.b16 %v650, %v648
    %v875 = vpack.c.b16 %v653, %v651
    %v876 = vpack.c.b16 %v654, %v652
    %v877 = vpack.c.b16 %v657, %v655
    %v878 = vpack.c.b16 %v658, %v656
    %v879 = vpack.c.b16 %v661, %v659
    %v880 = vpack.c.b16 %v662, %v660
    %v881 = vpack.c.b16 %v665, %v663
    %v882 = vpack.c.b16 %v666, %v664
    %v883 = vpack.c.b16 %v669, %v667
    %v884 = vpack.c.b16 %v670, %v668
    %v885 = vpack.c.b16 %v673, %v671
    %v886 = vpack.c.b16 %v674, %v672
    %v887 = vpack.c.b16 %v677, %v675
    %v888 = vpack.c.b16 %v678, %v676
    %v889 = vpack.c.b16 %v681, %v679
    %v890 = vpack.c.b16 %v682, %v680
    %v891 = vpack.c.b16 %v685, %v683
    %v892 = vpack.c.b16 %v686, %v684
    %v893 = vpack.c.b16 %v689, %v687
    %v894 = vpack.c.b16 %v690, %v688
    %v895 = vpack.c.b16 %v693, %v691
    %v896 = vpack.c.b16 %v694, %v692
    %v897 = vpack.c.b16 %v697, %v695
    %v898 = vpack.c.b16 %v698, %v696
    %v899 = vpack.c.b16 %v701, %v699
    %v900 = vpack.c.b16 %v702, %v700
    %v901 = vpack.c.b16 %v705, %v703
    %v902 = vpack.c.b16 %v706, %v704
    %v903 = vpack.c.b16 %v709, %v707
    %v904 = vpack.c.b16 %v710, %v708
    %v905 = vpack.c.b16 %v713, %v711
    %v906 = vpack.c.b16 %v714, %v712
    %v907 = vpack.c.b16 %v717, %v715
    %v908 = vpack.c.b16 %v718, %v716
    %v909 = vpack.c.b16 %v721, %v719
    %v910 = vpack.c.b16 %v722, %v720
    %v911 = vpack.c.b16 %v725, %v723
    %v912 = vpack.c.b16 %v726, %v724
    %v913 = vpack.c.b16 %v729, %v727
    %v914 = vpack.c.b16 %v730, %v728
    %v915 = vpack.c.b16 %v733, %v731
    %v916 = vpack.c.b16 %v734, %v732
    %v917 = vpack.c.b16 %v737, %v735
    %v918 = vpack.c.b16 %v738, %v736
    %v919 = vpack.c.b16 %v741, %v739
    %v920 = vpack.c.b16 %v742, %v740
    %v921 = vpack.c.b16 %v745, %v743
    %v922 = vpack.c.b16 %v746, %v744
    %v923 = vpack.c.b16 %v749, %v747
    %v924 = vpack.c.b16 %v750, %v748
    %v925 = vpack.c.b16 %v753, %v751
    %v926 = vpack.c.b16 %v754, %v752
    %v927 = vpack.c.b16 %v757, %v755
    %v928 = vpack.c.b16 %v758, %v756
    %v929 = vpack.c.b16 %v761, %v759
    %v930 = vpack.c.b16 %v762, %v760
    %v931 = vpack.c.b16 %v765, %v763
    %v932 = vpack.c.b16 %v766, %v764
    %v933 = vpack.c.b16 %v769, %v767
    %v934 = vpack.c.b16 %v770, %v768
    %v935 = vpack.c.b16 %v773, %v771
    %v936 = vpack.c.b16 %v774, %v772
    %v937 = vpack.c.b16 %v777, %v775
    %v938 = vpack.c.b16 %v778, %v776
    %1099 = vmatpush.bf16.msra.mxu0 %v793
    %1100 = vmatpush.bf16.msra.mxu0 %v791
    %1101 = vmatpush.bf16.msra.mxu0 %v789
    %1102 = vmatpush.bf16.msra.mxu0 %v787
    %1103 = vmatpush.bf16.msra.mxu0 %v785
    %1104 = vmatpush.bf16.msra.mxu0 %v783
    %1105 = vmatpush.bf16.msra.mxu0 %v781
    %1106 = vmatpush.bf16.msra.mxu0 %v779
    %1107 = vmatmul.bf16.gmra.mxu0 %v123
    %v1108 = vpop.f32.mrf.mxu0
    %v1109 = vadd.f32 %v295, %v1108
    %v1110 = vpop.f32.mrf.mxu0
    %v1111 = vadd.f32 %v295, %v1110
    %1112 = vdwg.mxu0
    %1113 = vmatpush.bf16.msra.mxu0 %v809
    %1114 = vmatpush.bf16.msra.mxu0 %v807
    %1115 = vmatpush.bf16.msra.mxu0 %v805
    %1116 = vmatpush.bf16.msra.mxu0 %v803
    %1117 = vmatpush.bf16.msra.mxu0 %v801
    %1118 = vmatpush.bf16.msra.mxu0 %v799
    %1119 = vmatpush.bf16.msra.mxu0 %v797
    %1120 = vmatpush.bf16.msra.mxu0 %v795
    %1121 = vmatmul.bf16.gmra.mxu0 %v124
    %v1122 = vpop.f32.mrf.mxu0
    %v1123 = vadd.f32 %v1109, %v1122
    %v1124 = vpop.f32.mrf.mxu0
    %v1125 = vadd.f32 %v1111, %v1124
    %1126 = vdwg.mxu0
    %1127 = vmatpush.bf16.msra.mxu0 %v825
    %1128 = vmatpush.bf16.msra.mxu0 %v823
    %1129 = vmatpush.bf16.msra.mxu0 %v821
    %1130 = vmatpush.bf16.msra.mxu0 %v819
    %1131 = vmatpush.bf16.msra.mxu0 %v817
    %1132 = vmatpush.bf16.msra.mxu0 %v815
    %1133 = vmatpush.bf16.msra.mxu0 %v813
    %1134 = vmatpush.bf16.msra.mxu0 %v811
    %1135 = vmatmul.bf16.gmra.mxu0 %v125
    %v1136 = vpop.f32.mrf.mxu0
    %v1137 = vadd.f32 %v1123, %v1136
    %v1138 = vpop.f32.mrf.mxu0
    %v1139 = vadd.f32 %v1125, %v1138
    %1140 = vdwg.mxu0
    %1141 = vmatpush.bf16.msra.mxu0 %v841
    %1142 = vmatpush.bf16.msra.mxu0 %v839
    %1143 = vmatpush.bf16.msra.mxu0 %v837
    %1144 = vmatpush.bf16.msra.mxu0 %v835
    %1145 = vmatpush.bf16.msra.mxu0 %v833
    %1146 = vmatpush.bf16.msra.mxu0 %v831
    %1147 = vmatpush.bf16.msra.mxu0 %v829
    %1148 = vmatpush.bf16.msra.mxu0 %v827
    %1149 = vmatmul.bf16.gmra.mxu0 %v126
    %v1150 = vpop.f32.mrf.mxu0
    %v1151 = vadd.f32 %v1137, %v1150
    %v1152 = vpop.f32.mrf.mxu0
    %v1153 = vadd.f32 %v1139, %v1152
    %1154 = vdwg.mxu0
    %1155 = vmatpush.bf16.msra.mxu0 %v857
    %1156 = vmatpush.bf16.msra.mxu0 %v855
    %1157 = vmatpush.bf16.msra.mxu0 %v853
    %1158 = vmatpush.bf16.msra.mxu0 %v851
    %1159 = vmatpush.bf16.msra.mxu0 %v849
    %1160 = vmatpush.bf16.msra.mxu0 %v847
    %1161 = vmatpush.bf16.msra.mxu0 %v845
    %1162 = vmatpush.bf16.msra.mxu0 %v843
    %1163 = vmatmul.bf16.gmra.mxu0 %v127
    %v1164 = vpop.f32.mrf.mxu0
    %v1165 = vadd.f32 %v1151, %v1164
    %v1166 = vpop.f32.mrf.mxu0
    %v1167 = vadd.f32 %v1153, %v1166
    %1168 = vdwg.mxu0
    %1169 = vmatpush.bf16.msra.mxu0 %v873
    %1170 = vmatpush.bf16.msra.mxu0 %v871
    %1171 = vmatpush.bf16.msra.mxu0 %v869
    %1172 = vmatpush.bf16.msra.mxu0 %v867
    %1173 = vmatpush.bf16.msra.mxu0 %v865
    %1174 = vmatpush.bf16.msra.mxu0 %v863
    %1175 = vmatpush.bf16.msra.mxu0 %v861
    %1176 = vmatpush.bf16.msra.mxu0 %v859
    %1177 = vmatmul.bf16.gmra.mxu0 %v128
    %v1178 = vpop.f32.mrf.mxu0
    %v1179 = vadd.f32 %v1165, %v1178
    %v1180 = vpop.f32.mrf.mxu0
    %v1181 = vadd.f32 %v1167, %v1180
    %1182 = vdwg.mxu0
    %1183 = vmatpush.bf16.msra.mxu0 %v889
    %1184 = vmatpush.bf16.msra.mxu0 %v887
    %1185 = vmatpush.bf16.msra.mxu0 %v885
    %1186 = vmatpush.bf16.msra.mxu0 %v883
    %1187 = vmatpush.bf16.msra.mxu0 %v881
    %1188 = vmatpush.bf16.msra.mxu0 %v879
    %1189 = vmatpush.bf16.msra.mxu0 %v877
    %1190 = vmatpush.bf16.msra.mxu0 %v875
    %1191 = vmatmul.bf16.gmra.mxu0 %v129
    %v1192 = vpop.f32.mrf.mxu0
    %v1193 = vadd.f32 %v1179, %v1192
    %v1194 = vpop.f32.mrf.mxu0
    %v1195 = vadd.f32 %v1181, %v1194
    %1196 = vdwg.mxu0
    %1197 = vmatpush.bf16.msra.mxu0 %v905
    %1198 = vmatpush.bf16.msra.mxu0 %v903
    %1199 = vmatpush.bf16.msra.mxu0 %v901
    %1200 = vmatpush.bf16.msra.mxu0 %v899
    %1201 = vmatpush.bf16.msra.mxu0 %v897
    %1202 = vmatpush.bf16.msra.mxu0 %v895
    %1203 = vmatpush.bf16.msra.mxu0 %v893
    %1204 = vmatpush.bf16.msra.mxu0 %v891
    %1205 = vmatmul.bf16.gmra.mxu0 %v130
    %v1206 = vpop.f32.mrf.mxu0
    %v1207 = vadd.f32 %v1193, %v1206
    %v1208 = vpop.f32.mrf.mxu0
    %v1209 = vadd.f32 %v1195, %v1208
    %1210 = vdwg.mxu0
    %1211 = vmatpush.bf16.msra.mxu0 %v921
    %1212 = vmatpush.bf16.msra.mxu0 %v919
    %1213 = vmatpush.bf16.msra.mxu0 %v917
    %1214 = vmatpush.bf16.msra.mxu0 %v915
    %1215 = vmatpush.bf16.msra.mxu0 %v913
    %1216 = vmatpush.bf16.msra.mxu0 %v911
    %1217 = vmatpush.bf16.msra.mxu0 %v909
    %1218 = vmatpush.bf16.msra.mxu0 %v907
    %1219 = vmatmul.bf16.gmra.mxu0 %v131
    %v1220 = vpop.f32.mrf.mxu0
    %v1221 = vadd.f32 %v1207, %v1220
    %v1222 = vpop.f32.mrf.mxu0
    %v1223 = vadd.f32 %v1209, %v1222
    %1224 = vdwg.mxu0
    %1225 = vmatpush.bf16.msra.mxu0 %v937
    %1226 = vmatpush.bf16.msra.mxu0 %v935
    %1227 = vmatpush.bf16.msra.mxu0 %v933
    %1228 = vmatpush.bf16.msra.mxu0 %v931
    %1229 = vmatpush.bf16.msra.mxu0 %v929
    %1230 = vmatpush.bf16.msra.mxu0 %v927
    %1231 = vmatpush.bf16.msra.mxu0 %v925
    %1232 = vmatpush.bf16.msra.mxu0 %v923
    %1233 = vmatmul.bf16.gmra.mxu0 %v132
    %v1234 = vpop.f32.mrf.mxu0
    %v1235 = vadd.f32 %v1221, %v1234
    %v1236 = vpop.f32.mrf.mxu0
    %v1237 = vadd.f32 %v1223, %v1236
    %1238 = vdwg.mxu0
    %1239 = vmatpush.bf16.msra.mxu0 %v794
    %1240 = vmatpush.bf16.msra.mxu0 %v792
    %1241 = vmatpush.bf16.msra.mxu0 %v790
    %1242 = vmatpush.bf16.msra.mxu0 %v788
    %1243 = vmatpush.bf16.msra.mxu0 %v786
    %1244 = vmatpush.bf16.msra.mxu0 %v784
    %1245 = vmatpush.bf16.msra.mxu0 %v782
    %1246 = vmatpush.bf16.msra.mxu0 %v780
    %1247 = vmatmul.bf16.gmra.mxu0 %v123
    %v1248 = vpop.f32.mrf.mxu0
    %v1249 = vadd.f32 %v296, %v1248
    %v1250 = vpop.f32.mrf.mxu0
    %v1251 = vadd.f32 %v296, %v1250
    %1252 = vdwg.mxu0
    %1253 = vmatpush.bf16.msra.mxu0 %v810
    %1254 = vmatpush.bf16.msra.mxu0 %v808
    %1255 = vmatpush.bf16.msra.mxu0 %v806
    %1256 = vmatpush.bf16.msra.mxu0 %v804
    %1257 = vmatpush.bf16.msra.mxu0 %v802
    %1258 = vmatpush.bf16.msra.mxu0 %v800
    %1259 = vmatpush.bf16.msra.mxu0 %v798
    %1260 = vmatpush.bf16.msra.mxu0 %v796
    %1261 = vmatmul.bf16.gmra.mxu0 %v124
    %v1262 = vpop.f32.mrf.mxu0
    %v1263 = vadd.f32 %v1249, %v1262
    %v1264 = vpop.f32.mrf.mxu0
    %v1265 = vadd.f32 %v1251, %v1264
    %1266 = vdwg.mxu0
    %1267 = vmatpush.bf16.msra.mxu0 %v826
    %1268 = vmatpush.bf16.msra.mxu0 %v824
    %1269 = vmatpush.bf16.msra.mxu0 %v822
    %1270 = vmatpush.bf16.msra.mxu0 %v820
    %1271 = vmatpush.bf16.msra.mxu0 %v818
    %1272 = vmatpush.bf16.msra.mxu0 %v816
    %1273 = vmatpush.bf16.msra.mxu0 %v814
    %1274 = vmatpush.bf16.msra.mxu0 %v812
    %1275 = vmatmul.bf16.gmra.mxu0 %v125
    %v1276 = vpop.f32.mrf.mxu0
    %v1277 = vadd.f32 %v1263, %v1276
    %v1278 = vpop.f32.mrf.mxu0
    %v1279 = vadd.f32 %v1265, %v1278
    %1280 = vdwg.mxu0
    %1281 = vmatpush.bf16.msra.mxu0 %v842
    %1282 = vmatpush.bf16.msra.mxu0 %v840
    %1283 = vmatpush.bf16.msra.mxu0 %v838
    %1284 = vmatpush.bf16.msra.mxu0 %v836
    %1285 = vmatpush.bf16.msra.mxu0 %v834
    %1286 = vmatpush.bf16.msra.mxu0 %v832
    %1287 = vmatpush.bf16.msra.mxu0 %v830
    %1288 = vmatpush.bf16.msra.mxu0 %v828
    %1289 = vmatmul.bf16.gmra.mxu0 %v126
    %v1290 = vpop.f32.mrf.mxu0
    %v1291 = vadd.f32 %v1277, %v1290
    %v1292 = vpop.f32.mrf.mxu0
    %v1293 = vadd.f32 %v1279, %v1292
    %1294 = vdwg.mxu0
    %1295 = vmatpush.bf16.msra.mxu0 %v858
    %1296 = vmatpush.bf16.msra.mxu0 %v856
    %1297 = vmatpush.bf16.msra.mxu0 %v854
    %1298 = vmatpush.bf16.msra.mxu0 %v852
    %1299 = vmatpush.bf16.msra.mxu0 %v850
    %1300 = vmatpush.bf16.msra.mxu0 %v848
    %1301 = vmatpush.bf16.msra.mxu0 %v846
    %1302 = vmatpush.bf16.msra.mxu0 %v844
    %1303 = vmatmul.bf16.gmra.mxu0 %v127
    %v1304 = vpop.f32.mrf.mxu0
    %v1305 = vadd.f32 %v1291, %v1304
    %v1306 = vpop.f32.mrf.mxu0
    %v1307 = vadd.f32 %v1293, %v1306
    %1308 = vdwg.mxu0
    %1309 = vmatpush.bf16.msra.mxu0 %v874
    %1310 = vmatpush.bf16.msra.mxu0 %v872
    %1311 = vmatpush.bf16.msra.mxu0 %v870
    %1312 = vmatpush.bf16.msra.mxu0 %v868
    %1313 = vmatpush.bf16.msra.mxu0 %v866
    %1314 = vmatpush.bf16.msra.mxu0 %v864
    %1315 = vmatpush.bf16.msra.mxu0 %v862
    %1316 = vmatpush.bf16.msra.mxu0 %v860
    %1317 = vmatmul.bf16.gmra.mxu0 %v128
    %v1318 = vpop.f32.mrf.mxu0
    %v1319 = vadd.f32 %v1305, %v1318
    %v1320 = vpop.f32.mrf.mxu0
    %v1321 = vadd.f32 %v1307, %v1320
    %1322 = vdwg.mxu0
    %1323 = vmatpush.bf16.msra.mxu0 %v890
    %1324 = vmatpush.bf16.msra.mxu0 %v888
    %1325 = vmatpush.bf16.msra.mxu0 %v886
    %1326 = vmatpush.bf16.msra.mxu0 %v884
    %1327 = vmatpush.bf16.msra.mxu0 %v882
    %1328 = vmatpush.bf16.msra.mxu0 %v880
    %1329 = vmatpush.bf16.msra.mxu0 %v878
    %1330 = vmatpush.bf16.msra.mxu0 %v876
    %1331 = vmatmul.bf16.gmra.mxu0 %v129
    %v1332 = vpop.f32.mrf.mxu0
    %v1333 = vadd.f32 %v1319, %v1332
    %v1334 = vpop.f32.mrf.mxu0
    %v1335 = vadd.f32 %v1321, %v1334
    %1336 = vdwg.mxu0
    %1337 = vmatpush.bf16.msra.mxu0 %v906
    %1338 = vmatpush.bf16.msra.mxu0 %v904
    %1339 = vmatpush.bf16.msra.mxu0 %v902
    %1340 = vmatpush.bf16.msra.mxu0 %v900
    %1341 = vmatpush.bf16.msra.mxu0 %v898
    %1342 = vmatpush.bf16.msra.mxu0 %v896
    %1343 = vmatpush.bf16.msra.mxu0 %v894
    %1344 = vmatpush.bf16.msra.mxu0 %v892
    %1345 = vmatmul.bf16.gmra.mxu0 %v130
    %v1346 = vpop.f32.mrf.mxu0
    %v1347 = vadd.f32 %v1333, %v1346
    %v1348 = vpop.f32.mrf.mxu0
    %v1349 = vadd.f32 %v1335, %v1348
    %1350 = vdwg.mxu0
    %1351 = vmatpush.bf16.msra.mxu0 %v922
    %1352 = vmatpush.bf16.msra.mxu0 %v920
    %1353 = vmatpush.bf16.msra.mxu0 %v918
    %1354 = vmatpush.bf16.msra.mxu0 %v916
    %1355 = vmatpush.bf16.msra.mxu0 %v914
    %1356 = vmatpush.bf16.msra.mxu0 %v912
    %1357 = vmatpush.bf16.msra.mxu0 %v910
    %1358 = vmatpush.bf16.msra.mxu0 %v908
    %1359 = vmatmul.bf16.gmra.mxu0 %v131
    %v1360 = vpop.f32.mrf.mxu0
    %v1361 = vadd.f32 %v1347, %v1360
    %v1362 = vpop.f32.mrf.mxu0
    %v1363 = vadd.f32 %v1349, %v1362
    %1364 = vdwg.mxu0
    %1365 = vmatpush.bf16.msra.mxu0 %v938
    %1366 = vmatpush.bf16.msra.mxu0 %v936
    %1367 = vmatpush.bf16.msra.mxu0 %v934
    %1368 = vmatpush.bf16.msra.mxu0 %v932
    %1369 = vmatpush.bf16.msra.mxu0 %v930
    %1370 = vmatpush.bf16.msra.mxu0 %v928
    %1371 = vmatpush.bf16.msra.mxu0 %v926
    %1372 = vmatpush.bf16.msra.mxu0 %v924
    %1373 = vmatmul.bf16.gmra.mxu0 %v132
    %v1374 = vpop.f32.mrf.mxu0
    %v1375 = vadd.f32 %v1361, %v1374
    %v1376 = vpop.f32.mrf.mxu0
    %v1377 = vadd.f32 %v1363, %v1376
    %1378 = vdwg.mxu0
    %v1379 = vmax.f32 %v1235, 0.0
    %v1380 = vmax.f32 %v1375, 0.0
    %v1381 = vmax.f32 %v1237, 0.0
    %v1382 = vmax.f32 %v1377, 0.0
    %v1383 = vpack.c.bf16 %v1381, %v1379
    %v1384 = vpack.c.bf16 %v1382, %v1380
    %v1385 = vld [vmem:[#allocation8] sm:$0xf]
    %v1386 = vld [vmem:[#allocation8 + $0x4] sm:$0xf]
    %v1387 = vld [vmem:[#allocation8 + $0x8] sm:$0xf]
    %v1388 = vld [vmem:[#allocation8 + $0xc] sm:$0xf]
    %v1389 = vld [vmem:[#allocation8 + $0x10] sm:$0xf]
    %v1390 = vld [vmem:[#allocation8 + $0x14] sm:$0xf]
    %v1391 = vld [vmem:[#allocation8 + $0x18] sm:$0xf]
    %v1392 = vld [vmem:[#allocation8 + $0x1c] sm:$0xf]
    %v1393 = vld [vmem:[#allocation8 + $0x20] sm:$0xf]
    %v1394 = vld [vmem:[#allocation8 + $0x24] sm:$0xf]
    %v1395 = vld [vmem:[#allocation8 + $0x28] sm:$0xf]
    %v1396 = vld [vmem:[#allocation8 + $0x2c] sm:$0xf]
    %v1397 = vld [vmem:[#allocation8 + $0x30] sm:$0xf]
    %v1398 = vld [vmem:[#allocation8 + $0x34] sm:$0xf]
    %v1399 = vld [vmem:[#allocation8 + $0x38] sm:$0xf]
    %v1400 = vld [vmem:[#allocation8 + $0x3c] sm:$0xf]
    %v1401 = vld [vmem:[#allocation8 + $0x40] sm:$0xf]
    %v1402 = vld [vmem:[#allocation8 + $0x44] sm:$0xf]
    %v1403 = vld [vmem:[#allocation8 + $0x48] sm:$0xf]
    %v1404 = vld [vmem:[#allocation8 + $0x4c] sm:$0xf]
    %v1405 = vld [vmem:[#allocation8 + $0x50] sm:$0xf]
    %v1406 = vld [vmem:[#allocation8 + $0x54] sm:$0xf]
    %v1407 = vld [vmem:[#allocation8 + $0x58] sm:$0xf]
    %v1408 = vld [vmem:[#allocation8 + $0x5c] sm:$0xf]
    %v1409 = vld [vmem:[#allocation8 + $0x60] sm:$0xf]
    %v1410 = vld [vmem:[#allocation8 + $0x64] sm:$0xf]
    %v1411 = vld [vmem:[#allocation8 + $0x68] sm:$0xf]
    %v1412 = vld [vmem:[#allocation8 + $0x6c] sm:$0xf]
    %v1413 = vld [vmem:[#allocation8 + $0x70] sm:$0xf]
    %v1414 = vld [vmem:[#allocation8 + $0x74] sm:$0xf]
    %v1415 = vld [vmem:[#allocation8 + $0x78] sm:$0xf]
    %v1416 = vld [vmem:[#allocation8 + $0x7c] sm:$0xf]
    %v1417 = vld [vmem:[%s4] sm:$0x1]
    %v1419 = vperm.slane %v1417, 0
    %v1453 = vunpack.c.l.b16 %v1385
    %v1454 = vunpack.c.l.b16 %v1386
    %v1455 = vunpack.c.l.b16 %v1387
    %v1456 = vunpack.c.l.b16 %v1388
    %v1457 = vunpack.c.l.b16 %v1389
    %v1458 = vunpack.c.l.b16 %v1390
    %v1459 = vunpack.c.l.b16 %v1391
    %v1460 = vunpack.c.l.b16 %v1392
    %v1461 = vunpack.c.l.b16 %v1393
    %v1462 = vunpack.c.l.b16 %v1394
    %v1463 = vunpack.c.l.b16 %v1395
    %v1464 = vunpack.c.l.b16 %v1396
    %v1465 = vunpack.c.l.b16 %v1397
    %v1466 = vunpack.c.l.b16 %v1398
    %v1467 = vunpack.c.l.b16 %v1399
    %v1468 = vunpack.c.l.b16 %v1400
    %v1469 = vunpack.c.l.b16 %v1401
    %v1470 = vunpack.c.l.b16 %v1402
    %v1471 = vunpack.c.l.b16 %v1403
    %v1472 = vunpack.c.l.b16 %v1404
    %v1473 = vunpack.c.l.b16 %v1405
    %v1474 = vunpack.c.l.b16 %v1406
    %v1475 = vunpack.c.l.b16 %v1407
    %v1476 = vunpack.c.l.b16 %v1408
    %v1477 = vunpack.c.l.b16 %v1409
    %v1478 = vunpack.c.l.b16 %v1410
    %v1479 = vunpack.c.l.b16 %v1411
    %v1480 = vunpack.c.l.b16 %v1412
    %v1481 = vunpack.c.l.b16 %v1413
    %v1482 = vunpack.c.l.b16 %v1414
    %v1483 = vunpack.c.l.b16 %v1415
    %v1484 = vunpack.c.l.b16 %v1416
    %v1485 = vpack.c.b16 %v1454, %v1453
    %v1486 = vpack.c.b16 %v1456, %v1455
    %v1487 = vpack.c.b16 %v1458, %v1457
    %v1488 = vpack.c.b16 %v1460, %v1459
    %v1489 = vpack.c.b16 %v1462, %v1461
    %v1490 = vpack.c.b16 %v1464, %v1463
    %v1491 = vpack.c.b16 %v1466, %v1465
    %v1492 = vpack.c.b16 %v1468, %v1467
    %v1493 = vpack.c.b16 %v1470, %v1469
    %v1494 = vpack.c.b16 %v1472, %v1471
    %v1495 = vpack.c.b16 %v1474, %v1473
    %v1496 = vpack.c.b16 %v1476, %v1475
    %v1497 = vpack.c.b16 %v1478, %v1477
    %v1498 = vpack.c.b16 %v1480, %v1479
    %v1499 = vpack.c.b16 %v1482, %v1481
    %v1500 = vpack.c.b16 %v1484, %v1483
    %1517 = vmatpush.bf16.msra.mxu0 %v1492
    %1518 = vmatpush.bf16.msra.mxu0 %v1491
    %1519 = vmatpush.bf16.msra.mxu0 %v1490
    %1520 = vmatpush.bf16.msra.mxu0 %v1489
    %1521 = vmatpush.bf16.msra.mxu0 %v1488
    %1522 = vmatpush.bf16.msra.mxu0 %v1487
    %1523 = vmatpush.bf16.msra.mxu0 %v1486
    %1524 = vmatpush.bf16.msra.mxu0 %v1485
    %1525 = vmatmul.bf16.gmra.mxu0 %v1383
    %v1526 = vpop.f32.mrf.mxu0
    %v1527 = vadd.f32 %v1419, %v1526
    %v1528 = vpop.f32.mrf.mxu0
    %v1529 = vadd.f32 %v1419, %v1528
    %1530 = vdwg.mxu0
    %1531 = vmatpush.bf16.msra.mxu0 %v1500
    %1532 = vmatpush.bf16.msra.mxu0 %v1499
    %1533 = vmatpush.bf16.msra.mxu0 %v1498
    %1534 = vmatpush.bf16.msra.mxu0 %v1497
    %1535 = vmatpush.bf16.msra.mxu0 %v1496
    %1536 = vmatpush.bf16.msra.mxu0 %v1495
    %1537 = vmatpush.bf16.msra.mxu0 %v1494
    %1538 = vmatpush.bf16.msra.mxu0 %v1493
    %1539 = vmatmul.bf16.gmra.mxu0 %v1384
    %v1540 = vpop.f32.mrf.mxu0
    %v1541 = vadd.f32 %v1527, %v1540
    %v1542 = vpop.f32.mrf.mxu0
    %v1543 = vadd.f32 %v1529, %v1542
    %1544 = vdwg.mxu0
    %v1545 = vmax.f32 %v1541, 0.0
    %v1546 = vmax.f32 %v1543, 0.0
    %v1547 = vpack.c.bf16 %v1546, %v1545
    %v1548 = vld [vmem:[#allocation10] sm:$0xf]
    %v1549 = vld [vmem:[#allocation10 + $0x4] sm:$0xf]
    %v1550 = vld [vmem:[#allocation10 + $0x8] sm:$0xf]
    %v1551 = vld [vmem:[#allocation10 + $0xc] sm:$0xf]
    %v1552 = vld [vmem:[#allocation10 + $0x10] sm:$0xf]
    %v1553 = vld [vmem:[#allocation10 + $0x14] sm:$0xf]
    %v1554 = vld [vmem:[#allocation10 + $0x18] sm:$0xf]
    %v1555 = vld [vmem:[#allocation10 + $0x1c] sm:$0xf]
    %v1556 = vld [vmem:[#allocation10 + $0x20] sm:$0xf]
    %v1557 = vld [vmem:[#allocation10 + $0x24] sm:$0xf]
    %v1558 = vld [vmem:[#allocation10 + $0x28] sm:$0xf]
    %v1559 = vld [vmem:[#allocation10 + $0x2c] sm:$0xf]
    %v1560 = vld [vmem:[#allocation10 + $0x30] sm:$0xf]
    %v1561 = vld [vmem:[#allocation10 + $0x34] sm:$0xf]
    %v1562 = vld [vmem:[#allocation10 + $0x38] sm:$0xf]
    %v1563 = vld [vmem:[#allocation10 + $0x3c] sm:$0xf]
    %v1564 = vld [vmem:[%s6] sm:$0x1]
    %v1566 = vperm.slane %v1564, 0
    %v1584 = vunpack.c.l.b16 %v1548
    %v1585 = vunpack.c.l.b16 %v1549
    %v1586 = vunpack.c.l.b16 %v1550
    %v1587 = vunpack.c.l.b16 %v1551
    %v1588 = vunpack.c.l.b16 %v1552
    %v1589 = vunpack.c.l.b16 %v1553
    %v1590 = vunpack.c.l.b16 %v1554
    %v1591 = vunpack.c.l.b16 %v1555
    %v1592 = vunpack.c.l.b16 %v1556
    %v1593 = vunpack.c.l.b16 %v1557
    %v1594 = vunpack.c.l.b16 %v1558
    %v1595 = vunpack.c.l.b16 %v1559
    %v1596 = vunpack.c.l.b16 %v1560
    %v1597 = vunpack.c.l.b16 %v1561
    %v1598 = vunpack.c.l.b16 %v1562
    %v1599 = vunpack.c.l.b16 %v1563
    %v1600 = vpack.c.b16 %v1585, %v1584
    %v1601 = vpack.c.b16 %v1587, %v1586
    %v1602 = vpack.c.b16 %v1589, %v1588
    %v1603 = vpack.c.b16 %v1591, %v1590
    %v1604 = vpack.c.b16 %v1593, %v1592
    %v1605 = vpack.c.b16 %v1595, %v1594
    %v1606 = vpack.c.b16 %v1597, %v1596
    %v1607 = vpack.c.b16 %v1599, %v1598
    %1616 = vmatpush.bf16.msra.mxu0 %v1607
    %1617 = vmatpush.bf16.msra.mxu0 %v1606
    %1618 = vmatpush.bf16.msra.mxu0 %v1605
    %1619 = vmatpush.bf16.msra.mxu0 %v1604
    %1620 = vmatpush.bf16.msra.mxu0 %v1603
    %1621 = vmatpush.bf16.msra.mxu0 %v1602
    %1622 = vmatpush.bf16.msra.mxu0 %v1601
    %1623 = vmatpush.bf16.msra.mxu0 %v1600
    %1624 = vmatmul.bf16.gmra.mxu0 %v1547
    %v1625 = vpop.f32.mrf.mxu0
    %v1626 = vadd.f32 %v1566, %v1625
    %v1627 = vpop.f32.mrf.mxu0
    %v1628 = vadd.f32 %v1566, %v1627
    %1629 = vdwg.mxu0
    %v1630 = vpack.c.bf16 %v1626, %v1626
    %v1631 = vpack.c.bf16 %v1628, %v1628
    %1632 = vst [vmem:[#allocation11] sm:$0xf] %v1630
    %1633 = vst [vmem:[#allocation11 + $0x4] sm:$0xf] %v1631
    // Predicated region
    $region50: #{tpu_custom_call.1} parent=1 // pred_check
      _
    $region51: #{tpu_custom_call.1} parent=1 // pred_check_branch
      %1635 = sbr.rel (0) target = $region53
    $region52: #{tpu_custom_call.1} parent=1 // pred_region
      %1637 = vsyncadd [#allocation4], 0
      %s1638 = sshll.u32 [#allocation11], 4
      %s1639 = int_to_ptr.vmem [resolvable:$true] %s1638
      %s1640 = sshll.u32 %s7, 4
      %s1641 = int_to_ptr.hbm [resolvable:$true] %s1640
      %1646 = dma.vmem_to_hbm [thread:$0]  %s1639, 128, %s1641, [#allocation4], 64, 64, 4
    $region53: #{tpu_custom_call.1} parent=1 // pred_fallthru
      _
    // Predicated region
    $region54: #{tpu_custom_call.1} parent=1 // pred_check
      _
    $region55: #{tpu_custom_call.1} parent=1 // pred_check_branch
      %1648 = sbr.rel (0) target = $region57
    $region56: #{tpu_custom_call.1} parent=1 // pred_region
      %1650 = dma.done [#allocation4], 128
    $region57: #{tpu_custom_call.1} parent=1 // pred_fallthru
      _
    %1651 = vsyncpa [#allocation3], 1
    %1652 = vsyncpa [#allocation6], 1
    %1653 = vsyncpa [#allocation9], 1
    %1654 = vsyncpa [#allocation4], 1

</llo_original>
